<compile_context>
chip_gen: v7x
topology: tpu7x:2x2x1
jax: 0.10.0
libtpu: 0.0.40
codegen_flags: <defaults>
</compile_context>

<pallas_src>
from functools import partial

import jax
import jax.numpy as jnp
from jax.experimental import pallas as pl
from jax.experimental.pallas import tpu as pltpu

LANE = 128  # lane width / MXU-friendly padding unit


def _round_up(n, m):
    return ((n + m - 1) // m) * m


def mlp_kernel(x_ref,
               w1_ref, b1_ref,
               w2_ref, b2_ref,
               w3_ref, b3_ref,
               w4_ref, b4_ref,
               w5_ref, b5_ref,
               out_ref):
    # x_ref: (TM, D) f32 tile -> cast to bf16 in-kernel (VPU is idle anyway).
    h = x_ref[...].astype(jnp.bfloat16)
    for w_ref, b_ref in ((w1_ref, b1_ref), (w2_ref, b2_ref),
                         (w3_ref, b3_ref), (w4_ref, b4_ref)):
        h = jnp.dot(h, w_ref[...], preferred_element_type=jnp.float32) + b_ref[...]
        h = jnp.maximum(h, 0.0).astype(jnp.bfloat16)   # ReLU (Dropout = identity in eval)
    out_ref[...] = jnp.dot(h, w5_ref[...], preferred_element_type=jnp.float32) + b5_ref[...]


def prepare_params(params):
    """One-time: pad layer dims to multiples of 128 (fan_in of layer 0 stays at D
    so it matches x directly), cast weights to bf16, biases to (1, fo_pad) f32.
    Zero padding is semantics-preserving: padded columns stay exactly 0 through
    bias-add and ReLU, and padded fan_in rows multiply against those zeros."""
    prepared = []
    for li, (w, b) in enumerate(params):
        fi, fo = w.shape
        fi_p = fi if li == 0 else _round_up(fi, LANE)
        fo_p = _round_up(fo, LANE)
        w_p = jnp.zeros((fi_p, fo_p), jnp.float32).at[:fi, :fo].set(w).astype(jnp.bfloat16)
        b_p = jnp.zeros((1, fo_p), jnp.float32).at[0, :fo].set(b)
        prepared += [w_p, b_p]
    return prepared


def _choose_tm(B):
    # Multiple of 16 (bf16 sublane packing), cap 256 (v6e/v7x 2x256 MXU),
    # and aim for >= 2 tiles when B > 16 so v7x megacore gets balanced work.
    half = -(-B // 2)
    return min(256, max(16, _round_up(half, 16)))


@partial(jax.jit, static_argnums=(2,))
def mlp_classifier_forward(x, prepared, num_classes):
    """x: (B, D) or (B, S, F) f32; prepared: flat [w1,b1,...,w5,b5] from prepare_params."""
    if x.ndim == 3:
        x = x.reshape(x.shape[0], -1)          # same as torch .reshape(B, -1)
    B, D = x.shape
    C_pad = prepared[-2].shape[1]

    TM = _choose_tm(B)
    B_pad = _round_up(B, TM)
    x_p = x if B_pad == B else jnp.pad(x, ((0, B_pad - B), (0, 0)))

    in_specs = [pl.BlockSpec((TM, D), lambda i: (i, 0))]
    for a in prepared:
        # Full-array blocks with a constant index_map -> parameters stay
        # resident in VMEM across all batch tiles (DMA'd once).
        in_specs.append(pl.BlockSpec(a.shape, lambda i: (0, 0)))

    flops = 2 * B_pad * sum(prepared[2 * l].shape[0] * prepared[2 * l].shape[1]
                            for l in range(5))
    bytes_accessed = (x_p.size * 4
                      + sum(a.size * a.dtype.itemsize for a in prepared)
                      + B_pad * C_pad * 4)

    out = pl.pallas_call(
        mlp_kernel,
        out_shape=jax.ShapeDtypeStruct((B_pad, C_pad), jnp.float32),
        grid=(B_pad // TM,),
        in_specs=in_specs,
        out_specs=pl.BlockSpec((TM, C_pad), lambda i: (i, 0)),
        compiler_params=pltpu.CompilerParams(
            # Batch tiles are independent -> megacore sharding on v7x (2 TCs).
            dimension_semantics=("parallel",)),
        cost_estimate=pl.CostEstimate(flops=flops, transcendentals=0,
                                      bytes_accessed=bytes_accessed),
    )(x_p, *prepared)

    return out[:B, :num_classes]


def init_params(key, input_size, hidden_size, num_classes):
    """PyTorch nn.Linear default init: U(-1/sqrt(fan_in), 1/sqrt(fan_in))."""
    dims = [input_size, hidden_size, hidden_size, hidden_size, hidden_size, num_classes]
    params = []
    for i in range(5):
        fan_in, fan_out = dims[i], dims[i + 1]
        key, kw, kb = jax.random.split(key, 3)
        bound = 1.0 / jnp.sqrt(jnp.float32(fan_in))
        w = jax.random.uniform(kw, (fan_in, fan_out), jnp.float32, -bound, bound)
        b = jax.random.uniform(kb, (fan_out,), jnp.float32, -bound, bound)
        params.append((w, b))
    return params


def reference_forward(x, params):
    """Pure-JAX reference mirroring the kernel's numerics (bf16 operands, f32 accumulation)."""
    if x.ndim == 3:
        x = x.reshape(x.shape[0], -1)
    h = x.astype(jnp.bfloat16)
    for (w, b) in params[:-1]:
        h = jnp.dot(h, w.astype(jnp.bfloat16), preferred_element_type=jnp.float32) + b
        h = jnp.maximum(h, 0.0).astype(jnp.bfloat16)
    w, b = params[-1]
    return jnp.dot(h, w.astype(jnp.bfloat16), preferred_element_type=jnp.float32) + b


if __name__ == "__main__":
    key = jax.random.PRNGKey(0)
    k_x, k_p = jax.random.split(key)

    batch, seq, feat = 2, 8, 32          # 3-D input -> flattened to (2, 256)
    input_size = seq * feat
    hidden_size = 64
    num_classes = 10

    x = jax.random.normal(k_x, (batch, seq, feat), jnp.float32)
    params = init_params(k_p, input_size, hidden_size, num_classes)
    prepared = prepare_params(params)    # one-time padding / bf16 cast (hoisted out of forward)

    out = mlp_classifier_forward(x, prepared, num_classes)
    out = jax.block_until_ready(out)

    ref = reference_forward(x, params)
    assert out.shape == (batch, num_classes), out.shape
    assert jnp.allclose(out, ref, atol=1e-2, rtol=1e-2), \
        float(jnp.max(jnp.abs(out - ref)))

    print("KERNEL_OK")
</pallas_src>

<mosaic_0001>
module attributes {stable_mosaic.version = 11 : i64} {
  func.func @mlp_kernel(%arg0: i32, %arg1: memref<16x256xf32, #tpu.memory_space<vmem>>, %arg2: memref<256x128xbf16, #tpu.memory_space<vmem>>, %arg3: memref<1x128xf32, #tpu.memory_space<vmem>>, %arg4: memref<128x128xbf16, #tpu.memory_space<vmem>>, %arg5: memref<1x128xf32, #tpu.memory_space<vmem>>, %arg6: memref<128x128xbf16, #tpu.memory_space<vmem>>, %arg7: memref<1x128xf32, #tpu.memory_space<vmem>>, %arg8: memref<128x128xbf16, #tpu.memory_space<vmem>>, %arg9: memref<1x128xf32, #tpu.memory_space<vmem>>, %arg10: memref<128x128xbf16, #tpu.memory_space<vmem>>, %arg11: memref<1x128xf32, #tpu.memory_space<vmem>>, %arg12: memref<16x128xf32, #tpu.memory_space<vmem>>) attributes {dimension_semantics = [#tpu.dimension_semantics<parallel>], iteration_bounds = array<i64: 1>, scalar_prefetch = 0 : i64, scratch_operands = 0 : i64, tpu.core_type = #tpu.core_type<tc>, window_params = [{transform_indices = @transform_0, window_bounds = array<i64: 16, 256>}, {pipeline_mode = #tpu.pipeline_mode<synchronous>, transform_indices = @transform_1, window_bounds = array<i64: 256, 128>}, {pipeline_mode = #tpu.pipeline_mode<synchronous>, transform_indices = @transform_2, window_bounds = array<i64: 1, 128>}, {pipeline_mode = #tpu.pipeline_mode<synchronous>, transform_indices = @transform_3, window_bounds = array<i64: 128, 128>}, {pipeline_mode = #tpu.pipeline_mode<synchronous>, transform_indices = @transform_4, window_bounds = array<i64: 1, 128>}, {pipeline_mode = #tpu.pipeline_mode<synchronous>, transform_indices = @transform_5, window_bounds = array<i64: 128, 128>}, {pipeline_mode = #tpu.pipeline_mode<synchronous>, transform_indices = @transform_6, window_bounds = array<i64: 1, 128>}, {pipeline_mode = #tpu.pipeline_mode<synchronous>, transform_indices = @transform_7, window_bounds = array<i64: 128, 128>}, {pipeline_mode = #tpu.pipeline_mode<synchronous>, transform_indices = @transform_8, window_bounds = array<i64: 1, 128>}, {pipeline_mode = #tpu.pipeline_mode<synchronous>, transform_indices = @transform_9, window_bounds = array<i64: 128, 128>}, {pipeline_mode = #tpu.pipeline_mode<synchronous>, transform_indices = @transform_10, window_bounds = array<i64: 1, 128>}, {transform_indices = @transform_11, window_bounds = array<i64: 16, 128>}]} {
    %c0 = arith.constant 0 : index
    %c0_0 = arith.constant 0 : index
    %0 = vector.load %arg1[%c0, %c0_0] : memref<16x256xf32, #tpu.memory_space<vmem>>, vector<16x256xf32>
    %1 = arith.truncf %0 : vector<16x256xf32> to vector<16x256xbf16>
    %c0_1 = arith.constant 0 : index
    %c0_2 = arith.constant 0 : index
    %2 = vector.load %arg2[%c0_1, %c0_2] : memref<256x128xbf16, #tpu.memory_space<vmem>>, vector<256x128xbf16>
    %cst = arith.constant dense<0.000000e+00> : vector<16x128xf32>
    %3 = tpu.matmul %1, %2, %cst {dimension_numbers = #tpu.dot_dimension_numbers<[1], [0], [0], [1], [0, 0, 1, 1], [], []>} : vector<16x256xbf16>, vector<256x128xbf16>, vector<16x128xf32> -> vector<16x128xf32>
    %c0_3 = arith.constant 0 : index
    %c0_4 = arith.constant 0 : index
    %4 = vector.load %arg3[%c0_3, %c0_4] : memref<1x128xf32, #tpu.memory_space<vmem>>, vector<1x128xf32>
    %5 = vector.broadcast %4 : vector<1x128xf32> to vector<16x128xf32>
    %6 = arith.addf %3, %5 : vector<16x128xf32>
    %cst_5 = arith.constant 0.000000e+00 : f32
    %7 = vector.broadcast %cst_5 : f32 to vector<16x128xf32>
    %8 = arith.maximumf %6, %7 : vector<16x128xf32>
    %9 = arith.truncf %8 : vector<16x128xf32> to vector<16x128xbf16>
    %c0_6 = arith.constant 0 : index
    %c0_7 = arith.constant 0 : index
    %10 = vector.load %arg4[%c0_6, %c0_7] : memref<128x128xbf16, #tpu.memory_space<vmem>>, vector<128x128xbf16>
    %cst_8 = arith.constant dense<0.000000e+00> : vector<16x128xf32>
    %11 = tpu.matmul %9, %10, %cst_8 {dimension_numbers = #tpu.dot_dimension_numbers<[1], [0], [0], [1], [0, 0, 1, 1], [], []>} : vector<16x128xbf16>, vector<128x128xbf16>, vector<16x128xf32> -> vector<16x128xf32>
    %c0_9 = arith.constant 0 : index
    %c0_10 = arith.constant 0 : index
    %12 = vector.load %arg5[%c0_9, %c0_10] : memref<1x128xf32, #tpu.memory_space<vmem>>, vector<1x128xf32>
    %13 = vector.broadcast %12 : vector<1x128xf32> to vector<16x128xf32>
    %14 = arith.addf %11, %13 : vector<16x128xf32>
    %cst_11 = arith.constant 0.000000e+00 : f32
    %15 = vector.broadcast %cst_11 : f32 to vector<16x128xf32>
    %16 = arith.maximumf %14, %15 : vector<16x128xf32>
    %17 = arith.truncf %16 : vector<16x128xf32> to vector<16x128xbf16>
    %c0_12 = arith.constant 0 : index
    %c0_13 = arith.constant 0 : index
    %18 = vector.load %arg6[%c0_12, %c0_13] : memref<128x128xbf16, #tpu.memory_space<vmem>>, vector<128x128xbf16>
    %cst_14 = arith.constant dense<0.000000e+00> : vector<16x128xf32>
    %19 = tpu.matmul %17, %18, %cst_14 {dimension_numbers = #tpu.dot_dimension_numbers<[1], [0], [0], [1], [0, 0, 1, 1], [], []>} : vector<16x128xbf16>, vector<128x128xbf16>, vector<16x128xf32> -> vector<16x128xf32>
    %c0_15 = arith.constant 0 : index
    %c0_16 = arith.constant 0 : index
    %20 = vector.load %arg7[%c0_15, %c0_16] : memref<1x128xf32, #tpu.memory_space<vmem>>, vector<1x128xf32>
    %21 = vector.broadcast %20 : vector<1x128xf32> to vector<16x128xf32>
    %22 = arith.addf %19, %21 : vector<16x128xf32>
    %cst_17 = arith.constant 0.000000e+00 : f32
    %23 = vector.broadcast %cst_17 : f32 to vector<16x128xf32>
    %24 = arith.maximumf %22, %23 : vector<16x128xf32>
    %25 = arith.truncf %24 : vector<16x128xf32> to vector<16x128xbf16>
    %c0_18 = arith.constant 0 : index
    %c0_19 = arith.constant 0 : index
    %26 = vector.load %arg8[%c0_18, %c0_19] : memref<128x128xbf16, #tpu.memory_space<vmem>>, vector<128x128xbf16>
    %cst_20 = arith.constant dense<0.000000e+00> : vector<16x128xf32>
    %27 = tpu.matmul %25, %26, %cst_20 {dimension_numbers = #tpu.dot_dimension_numbers<[1], [0], [0], [1], [0, 0, 1, 1], [], []>} : vector<16x128xbf16>, vector<128x128xbf16>, vector<16x128xf32> -> vector<16x128xf32>
    %c0_21 = arith.constant 0 : index
    %c0_22 = arith.constant 0 : index
    %28 = vector.load %arg9[%c0_21, %c0_22] : memref<1x128xf32, #tpu.memory_space<vmem>>, vector<1x128xf32>
    %29 = vector.broadcast %28 : vector<1x128xf32> to vector<16x128xf32>
    %30 = arith.addf %27, %29 : vector<16x128xf32>
    %cst_23 = arith.constant 0.000000e+00 : f32
    %31 = vector.broadcast %cst_23 : f32 to vector<16x128xf32>
    %32 = arith.maximumf %30, %31 : vector<16x128xf32>
    %33 = arith.truncf %32 : vector<16x128xf32> to vector<16x128xbf16>
    %c0_24 = arith.constant 0 : index
    %c0_25 = arith.constant 0 : index
    %34 = vector.load %arg10[%c0_24, %c0_25] : memref<128x128xbf16, #tpu.memory_space<vmem>>, vector<128x128xbf16>
    %cst_26 = arith.constant dense<0.000000e+00> : vector<16x128xf32>
    %35 = tpu.matmul %33, %34, %cst_26 {dimension_numbers = #tpu.dot_dimension_numbers<[1], [0], [0], [1], [0, 0, 1, 1], [], []>} : vector<16x128xbf16>, vector<128x128xbf16>, vector<16x128xf32> -> vector<16x128xf32>
    %c0_27 = arith.constant 0 : index
    %c0_28 = arith.constant 0 : index
    %36 = vector.load %arg11[%c0_27, %c0_28] : memref<1x128xf32, #tpu.memory_space<vmem>>, vector<1x128xf32>
    %37 = vector.broadcast %36 : vector<1x128xf32> to vector<16x128xf32>
    %38 = arith.addf %35, %37 : vector<16x128xf32>
    %c0_29 = arith.constant 0 : index
    %c0_30 = arith.constant 0 : index
    %39 = vector.load %arg12[%c0_29, %c0_30] : memref<16x128xf32, #tpu.memory_space<vmem>>, vector<16x128xf32>
    tpu.vector_store %arg12[%c0_29, %c0_30], %38 {strides = array<i32>} : memref<16x128xf32, #tpu.memory_space<vmem>>, vector<16x128xf32>,
    return
  }
  func.func @transform_0(%arg0: i32) -> (i32, i32) {
    %c0_i32 = arith.constant 0 : i32
    %c0_i32_0 = arith.constant 0 : i32
    return %arg0, %c0_i32 : i32, i32
  }
  func.func @transform_1(%arg0: i32) -> (i32, i32) {
    %c0_i32 = arith.constant 0 : i32
    %c0_i32_0 = arith.constant 0 : i32
    %c0_i32_1 = arith.constant 0 : i32
    return %c0_i32, %c0_i32_0 : i32, i32
  }
  func.func @transform_2(%arg0: i32) -> (i32, i32) {
    %c0_i32 = arith.constant 0 : i32
    %c0_i32_0 = arith.constant 0 : i32
    %c0_i32_1 = arith.constant 0 : i32
    return %c0_i32, %c0_i32_0 : i32, i32
  }
  func.func @transform_3(%arg0: i32) -> (i32, i32) {
    %c0_i32 = arith.constant 0 : i32
    %c0_i32_0 = arith.constant 0 : i32
    %c0_i32_1 = arith.constant 0 : i32
    return %c0_i32, %c0_i32_0 : i32, i32
  }
  func.func @transform_4(%arg0: i32) -> (i32, i32) {
    %c0_i32 = arith.constant 0 : i32
    %c0_i32_0 = arith.constant 0 : i32
    %c0_i32_1 = arith.constant 0 : i32
    return %c0_i32, %c0_i32_0 : i32, i32
  }
  func.func @transform_5(%arg0: i32) -> (i32, i32) {
    %c0_i32 = arith.constant 0 : i32
    %c0_i32_0 = arith.constant 0 : i32
    %c0_i32_1 = arith.constant 0 : i32
    return %c0_i32, %c0_i32_0 : i32, i32
  }
  func.func @transform_6(%arg0: i32) -> (i32, i32) {
    %c0_i32 = arith.constant 0 : i32
    %c0_i32_0 = arith.constant 0 : i32
    %c0_i32_1 = arith.constant 0 : i32
    return %c0_i32, %c0_i32_0 : i32, i32
  }
  func.func @transform_7(%arg0: i32) -> (i32, i32) {
    %c0_i32 = arith.constant 0 : i32
    %c0_i32_0 = arith.constant 0 : i32
    %c0_i32_1 = arith.constant 0 : i32
    return %c0_i32, %c0_i32_0 : i32, i32
  }
  func.func @transform_8(%arg0: i32) -> (i32, i32) {
    %c0_i32 = arith.constant 0 : i32
    %c0_i32_0 = arith.constant 0 : i32
    %c0_i32_1 = arith.constant 0 : i32
    return %c0_i32, %c0_i32_0 : i32, i32
  }
  func.func @transform_9(%arg0: i32) -> (i32, i32) {
    %c0_i32 = arith.constant 0 : i32
    %c0_i32_0 = arith.constant 0 : i32
    %c0_i32_1 = arith.constant 0 : i32
    return %c0_i32, %c0_i32_0 : i32, i32
  }
  func.func @transform_10(%arg0: i32) -> (i32, i32) {
    %c0_i32 = arith.constant 0 : i32
    %c0_i32_0 = arith.constant 0 : i32
    %c0_i32_1 = arith.constant 0 : i32
    return %c0_i32, %c0_i32_0 : i32, i32
  }
  func.func @transform_11(%arg0: i32) -> (i32, i32) {
    %c0_i32 = arith.constant 0 : i32
    %c0_i32_0 = arith.constant 0 : i32
    return %arg0, %c0_i32 : i32, i32
  }
}

</mosaic_0001>

<llo_original>
// kernel: mlp_classifier_forward.1
$region0: #{mlp_classifier_forward.1}
  #allocation0 [shape = 'u32[]', space=smem, size = 0x4, offset = 0x4, fixed_abs, tag = 'smem constant byte address 0x4 - core index']
  #allocation1 [shape = 'u32[144,128]{1,0:T(1,128)}', space=vmem, size = 0x12000, scoped, tag = 'internal scratch']
  %s0 = inlined_call_operand.vmem [shape: f32[16,256], index: 0, kind: input, shape index: {}]
  %s1 = inlined_call_operand.hbm [shape: bf16[256,128], index: 1, kind: input, shape index: {}]
  %s2 = inlined_call_operand.vmem [shape: f32[1,128], index: 2, kind: input, shape index: {}]
  %s3 = inlined_call_operand.vmem [shape: bf16[128,128], index: 3, kind: input, shape index: {}]
  %s4 = inlined_call_operand.vmem [shape: f32[1,128], index: 4, kind: input, shape index: {}]
  %s5 = inlined_call_operand.hbm [shape: bf16[128,128], index: 5, kind: input, shape index: {}]
  %s6 = inlined_call_operand.vmem [shape: f32[1,128], index: 6, kind: input, shape index: {}]
  %s7 = inlined_call_operand.hbm [shape: bf16[128,128], index: 7, kind: input, shape index: {}]
  %s8 = inlined_call_operand.vmem [shape: f32[1,128], index: 8, kind: input, shape index: {}]
  %s9 = inlined_call_operand.hbm [shape: bf16[128,128], index: 9, kind: input, shape index: {}]
  %s10 = inlined_call_operand.vmem [shape: f32[1,128], index: 10, kind: input, shape index: {}]
  %s11 = inlined_call_operand.vmem [shape: f32[16,128], index: 11, kind: output, shape index: {}]
  %s12 = sld [smem:[#allocation0]]
  $region70: #{mlp_classifier_forward.1} parent=0
    _
  %s14 = ssub.s32 1, %s12
  %s15 = scalar_select 0, %s14, %s12
  $region1: #{mlp_classifier_forward.1} parent=0
    #allocation2 [shape = 'u8[65536]{0}', space=vmem, size = 0x10000, scoped, tag = 'input window, operand 1, single buffered']
    #allocation3 [shape = 's32[1]{0}', space=sflag, size = 0x4, scoped, tag = 'scoped memory for mlp_classifier_forward.1']
    #allocation4 [shape = 'u8[32768]{0}', space=vmem, size = 0x8000, scoped, tag = 'input window, operand 5, single buffered']
    #allocation5 [shape = 's32[1]{0}', space=sflag, size = 0x4, scoped, tag = 'scoped memory for mlp_classifier_forward.1']
    #allocation6 [shape = 'u8[32768]{0}', space=vmem, size = 0x8000, scoped, tag = 'input window, operand 7, single buffered']
    #allocation7 [shape = 'u8[32768]{0}', space=vmem, size = 0x8000, scoped, tag = 'input window, operand 9, single buffered']
    #allocation8 [shape = 's32[1]{0}', space=sflag, size = 0x4, scoped, tag = 'scoped memory for mlp_classifier_forward.1']
    %16 = vsyncpa [#allocation3], 0
    %17 = vsyncpa [#allocation5], 0
    %18 = vsyncpa [#allocation8], 0
    // Predicated region
    $region2: #{mlp_classifier_forward.1} parent=1 // pred_check
      _
    $region3: #{mlp_classifier_forward.1} parent=1 // pred_check_branch
      %20 = sbr.rel (0) target = $region5
    $region4: #{mlp_classifier_forward.1} parent=1 // pred_region
      _
    $region5: #{mlp_classifier_forward.1} parent=1 // pred_fallthru
      _
    // Predicated region
    $region6: #{mlp_classifier_forward.1} parent=1 // pred_check
      _
    $region7: #{mlp_classifier_forward.1} parent=1 // pred_check_branch
      %22 = sbr.rel (0) target = $region9
    $region8: #{mlp_classifier_forward.1} parent=1 // pred_region
      %s24 = ssub.s32 2048, 2048
      %25 = vsyncadd [#allocation3], %s24
      %s26 = sshll.u32 [#allocation2], 4
      %s27 = int_to_ptr.vmem [resolvable:$true] %s26
      %32 = dma.hbm_to_vmem [thread:$0]  %s1, 2048, %s27, [#allocation3], 64, 64, 4
    $region9: #{mlp_classifier_forward.1} parent=1 // pred_fallthru
      _
    // Predicated region
    $region10: #{mlp_classifier_forward.1} parent=1 // pred_check
      _
    $region11: #{mlp_classifier_forward.1} parent=1 // pred_check_branch
      %34 = sbr.rel (0) target = $region13
    $region12: #{mlp_classifier_forward.1} parent=1 // pred_region
      _
    $region13: #{mlp_classifier_forward.1} parent=1 // pred_fallthru
      _
    // Predicated region
    $region14: #{mlp_classifier_forward.1} parent=1 // pred_check
      _
    $region15: #{mlp_classifier_forward.1} parent=1 // pred_check_branch
      %36 = sbr.rel (0) target = $region17
    $region16: #{mlp_classifier_forward.1} parent=1 // pred_region
      _
    $region17: #{mlp_classifier_forward.1} parent=1 // pred_fallthru
      _
    // Predicated region
    $region18: #{mlp_classifier_forward.1} parent=1 // pred_check
      _
    $region19: #{mlp_classifier_forward.1} parent=1 // pred_check_branch
      %38 = sbr.rel (0) target = $region21
    $region20: #{mlp_classifier_forward.1} parent=1 // pred_region
      _
    $region21: #{mlp_classifier_forward.1} parent=1 // pred_fallthru
      _
    // Predicated region
    $region22: #{mlp_classifier_forward.1} parent=1 // pred_check
      _
    $region23: #{mlp_classifier_forward.1} parent=1 // pred_check_branch
      %40 = sbr.rel (0) target = $region25
    $region24: #{mlp_classifier_forward.1} parent=1 // pred_region
      %s42 = ssub.s32 1024, 1024
      %43 = vsyncadd [#allocation5], %s42
      %s44 = sshll.u32 [#allocation4], 4
      %s45 = int_to_ptr.vmem [resolvable:$true] %s44
      %50 = dma.hbm_to_vmem [thread:$0]  %s5, 1024, %s45, [#allocation5], 64, 64, 4
    $region25: #{mlp_classifier_forward.1} parent=1 // pred_fallthru
      _
    // Predicated region
    $region26: #{mlp_classifier_forward.1} parent=1 // pred_check
      _
    $region27: #{mlp_classifier_forward.1} parent=1 // pred_check_branch
      %52 = sbr.rel (0) target = $region29
    $region28: #{mlp_classifier_forward.1} parent=1 // pred_region
      _
    $region29: #{mlp_classifier_forward.1} parent=1 // pred_fallthru
      _
    // Predicated region
    $region30: #{mlp_classifier_forward.1} parent=1 // pred_check
      _
    $region31: #{mlp_classifier_forward.1} parent=1 // pred_check_branch
      %54 = sbr.rel (0) target = $region33
    $region32: #{mlp_classifier_forward.1} parent=1 // pred_region
      %s56 = ssub.s32 1024, 1024
      %57 = vsyncadd [#allocation5], %s56
      %s58 = sshll.u32 [#allocation6], 4
      %s59 = int_to_ptr.vmem [resolvable:$true] %s58
      %64 = dma.hbm_to_vmem [thread:$0]  %s7, 1024, %s59, [#allocation5], 64, 64, 4
    $region33: #{mlp_classifier_forward.1} parent=1 // pred_fallthru
      _
    // Predicated region
    $region34: #{mlp_classifier_forward.1} parent=1 // pred_check
      _
    $region35: #{mlp_classifier_forward.1} parent=1 // pred_check_branch
      %66 = sbr.rel (0) target = $region37
    $region36: #{mlp_classifier_forward.1} parent=1 // pred_region
      _
    $region37: #{mlp_classifier_forward.1} parent=1 // pred_fallthru
      _
    // Predicated region
    $region38: #{mlp_classifier_forward.1} parent=1 // pred_check
      _
    $region39: #{mlp_classifier_forward.1} parent=1 // pred_check_branch
      %68 = sbr.rel (0) target = $region41
    $region40: #{mlp_classifier_forward.1} parent=1 // pred_region
      %s70 = ssub.s32 1024, 1024
      %71 = vsyncadd [#allocation8], %s70
      %s72 = sshll.u32 [#allocation7], 4
      %s73 = int_to_ptr.vmem [resolvable:$true] %s72
      %78 = dma.hbm_to_vmem [thread:$0]  %s9, 1024, %s73, [#allocation8], 64, 64, 4
    $region41: #{mlp_classifier_forward.1} parent=1 // pred_fallthru
      _
    // Predicated region
    $region42: #{mlp_classifier_forward.1} parent=1 // pred_check
      _
    $region43: #{mlp_classifier_forward.1} parent=1 // pred_check_branch
      %80 = sbr.rel (0) target = $region45
    $region44: #{mlp_classifier_forward.1} parent=1 // pred_region
      _
    $region45: #{mlp_classifier_forward.1} parent=1 // pred_fallthru
      _
    // Predicated region
    $region46: #{mlp_classifier_forward.1} parent=1 // pred_check
      _
    $region47: #{mlp_classifier_forward.1} parent=1 // pred_check_branch
      %82 = sbr.rel (0) target = $region49
    $region48: #{mlp_classifier_forward.1} parent=1 // pred_region
      %83 = dma.done [#allocation3], 2048
    $region49: #{mlp_classifier_forward.1} parent=1 // pred_fallthru
      _
    // Predicated region
    $region50: #{mlp_classifier_forward.1} parent=1 // pred_check
      _
    $region51: #{mlp_classifier_forward.1} parent=1 // pred_check_branch
      %85 = sbr.rel (0) target = $region53
    $region52: #{mlp_classifier_forward.1} parent=1 // pred_region
      %86 = dma.done [#allocation5], 1024
    $region53: #{mlp_classifier_forward.1} parent=1 // pred_fallthru
      _
    // Predicated region
    $region54: #{mlp_classifier_forward.1} parent=1 // pred_check
      _
    $region55: #{mlp_classifier_forward.1} parent=1 // pred_check_branch
      %88 = sbr.rel (0) target = $region57
    $region56: #{mlp_classifier_forward.1} parent=1 // pred_region
      %89 = dma.done [#allocation5], 1024
    $region57: #{mlp_classifier_forward.1} parent=1 // pred_fallthru
      _
    // Predicated region
    $region58: #{mlp_classifier_forward.1} parent=1 // pred_check
      _
    $region59: #{mlp_classifier_forward.1} parent=1 // pred_check_branch
      %91 = sbr.rel (0) target = $region61
    $region60: #{mlp_classifier_forward.1} parent=1 // pred_region
      %92 = dma.done [#allocation8], 1024
    $region61: #{mlp_classifier_forward.1} parent=1 // pred_fallthru
      _
    %v94 = vld [vmem:[%s0] sm:$0xff]
    %v95 = vld [vmem:[%s0 + $0x8] sm:$0xff]
    %v96 = vld [vmem:[%s0 + $0x10] sm:$0xff]
    %v97 = vld [vmem:[%s0 + $0x18] sm:$0xff]
    %v98 = vpack.c.bf16 %v96, %v94
    %v99 = vpack.c.bf16 %v97, %v95
    %v100 = vld [vmem:[#allocation2] sm:$0xf]
    %v101 = vld [vmem:[#allocation2 + $0x4] sm:$0xf]
    %v102 = vld [vmem:[#allocation2 + $0x8] sm:$0xf]
    %v103 = vld [vmem:[#allocation2 + $0xc] sm:$0xf]
    %v104 = vld [vmem:[#allocation2 + $0x10] sm:$0xf]
    %v105 = vld [vmem:[#allocation2 + $0x14] sm:$0xf]
    %v106 = vld [vmem:[#allocation2 + $0x18] sm:$0xf]
    %v107 = vld [vmem:[#allocation2 + $0x1c] sm:$0xf]
    %v108 = vld [vmem:[#allocation2 + $0x20] sm:$0xf]
    %v109 = vld [vmem:[#allocation2 + $0x24] sm:$0xf]
    %v110 = vld [vmem:[#allocation2 + $0x28] sm:$0xf]
    %v111 = vld [vmem:[#allocation2 + $0x2c] sm:$0xf]
    %v112 = vld [vmem:[#allocation2 + $0x30] sm:$0xf]
    %v113 = vld [vmem:[#allocation2 + $0x34] sm:$0xf]
    %v114 = vld [vmem:[#allocation2 + $0x38] sm:$0xf]
    %v115 = vld [vmem:[#allocation2 + $0x3c] sm:$0xf]
    %v116 = vld [vmem:[#allocation2 + $0x40] sm:$0xf]
    %v117 = vld [vmem:[#allocation2 + $0x44] sm:$0xf]
    %v118 = vld [vmem:[#allocation2 + $0x48] sm:$0xf]
    %v119 = vld [vmem:[#allocation2 + $0x4c] sm:$0xf]
    %v120 = vld [vmem:[#allocation2 + $0x50] sm:$0xf]
    %v121 = vld [vmem:[#allocation2 + $0x54] sm:$0xf]
    %v122 = vld [vmem:[#allocation2 + $0x58] sm:$0xf]
    %v123 = vld [vmem:[#allocation2 + $0x5c] sm:$0xf]
    %v124 = vld [vmem:[#allocation2 + $0x60] sm:$0xf]
    %v125 = vld [vmem:[#allocation2 + $0x64] sm:$0xf]
    %v126 = vld [vmem:[#allocation2 + $0x68] sm:$0xf]
    %v127 = vld [vmem:[#allocation2 + $0x6c] sm:$0xf]
    %v128 = vld [vmem:[#allocation2 + $0x70] sm:$0xf]
    %v129 = vld [vmem:[#allocation2 + $0x74] sm:$0xf]
    %v130 = vld [vmem:[#allocation2 + $0x78] sm:$0xf]
    %v131 = vld [vmem:[#allocation2 + $0x7c] sm:$0xf]
    %v132 = vld [vmem:[%s2] sm:$0x1]
    %v134 = vlaneseq
    %v135 = vshrl.u32 %v134, 7
    %v136 = vsub.s32 0, %v135
    %v137 = vrot.slane %v132, %v136
    %v171 = vunpack.c.l.b16 %v100
    %v172 = vunpack.c.l.b16 %v101
    %v173 = vunpack.c.l.b16 %v102
    %v174 = vunpack.c.l.b16 %v103
    %v175 = vunpack.c.l.b16 %v104
    %v176 = vunpack.c.l.b16 %v105
    %v177 = vunpack.c.l.b16 %v106
    %v178 = vunpack.c.l.b16 %v107
    %v179 = vunpack.c.l.b16 %v108
    %v180 = vunpack.c.l.b16 %v109
    %v181 = vunpack.c.l.b16 %v110
    %v182 = vunpack.c.l.b16 %v111
    %v183 = vunpack.c.l.b16 %v112
    %v184 = vunpack.c.l.b16 %v113
    %v185 = vunpack.c.l.b16 %v114
    %v186 = vunpack.c.l.b16 %v115
    %v187 = vunpack.c.l.b16 %v116
    %v188 = vunpack.c.l.b16 %v117
    %v189 = vunpack.c.l.b16 %v118
    %v190 = vunpack.c.l.b16 %v119
    %v191 = vunpack.c.l.b16 %v120
    %v192 = vunpack.c.l.b16 %v121
    %v193 = vunpack.c.l.b16 %v122
    %v194 = vunpack.c.l.b16 %v123
    %v195 = vunpack.c.l.b16 %v124
    %v196 = vunpack.c.l.b16 %v125
    %v197 = vunpack.c.l.b16 %v126
    %v198 = vunpack.c.l.b16 %v127
    %v199 = vunpack.c.l.b16 %v128
    %v200 = vunpack.c.l.b16 %v129
    %v201 = vunpack.c.l.b16 %v130
    %v202 = vunpack.c.l.b16 %v131
    %v203 = vpack.c.b16 %v172, %v171
    %v204 = vpack.c.b16 %v174, %v173
    %v205 = vpack.c.b16 %v176, %v175
    %v206 = vpack.c.b16 %v178, %v177
    %v207 = vpack.c.b16 %v180, %v179
    %v208 = vpack.c.b16 %v182, %v181
    %v209 = vpack.c.b16 %v184, %v183
    %v210 = vpack.c.b16 %v186, %v185
    %v211 = vpack.c.b16 %v188, %v187
    %v212 = vpack.c.b16 %v190, %v189
    %v213 = vpack.c.b16 %v192, %v191
    %v214 = vpack.c.b16 %v194, %v193
    %v215 = vpack.c.b16 %v196, %v195
    %v216 = vpack.c.b16 %v198, %v197
    %v217 = vpack.c.b16 %v200, %v199
    %v218 = vpack.c.b16 %v202, %v201
    %235 = vmatprep.subr.bf16.mxu0 0
    %236 = vmatpush1.bf16.msra.mxu0 %v203
    %237 = vmatprep.subr.bf16.mxu0 0
    %238 = vmatpush1.bf16.msra.mxu0 %v204
    %239 = vmatprep.subr.bf16.mxu0 0
    %240 = vmatpush1.bf16.msra.mxu0 %v205
    %241 = vmatprep.subr.bf16.mxu0 0
    %242 = vmatpush1.bf16.msra.mxu0 %v206
    %243 = vmatprep.subr.bf16.mxu0 0
    %244 = vmatpush1.bf16.msra.mxu0 %v207
    %245 = vmatprep.subr.bf16.mxu0 0
    %246 = vmatpush1.bf16.msra.mxu0 %v208
    %247 = vmatprep.subr.bf16.mxu0 0
    %248 = vmatpush1.bf16.msra.mxu0 %v209
    %249 = vmatprep.subr.bf16.mxu0 0
    %250 = vmatpush1.bf16.msra.mxu0 %v210
    %251 = vmatprep.subr.bf16.mxu0 0
    %252 = vmatpush1.bf16.msra.mxu0 %v211
    %253 = vmatprep.subr.bf16.mxu0 0
    %254 = vmatpush1.bf16.msra.mxu0 %v212
    %255 = vmatprep.subr.bf16.mxu0 0
    %256 = vmatpush1.bf16.msra.mxu0 %v213
    %257 = vmatprep.subr.bf16.mxu0 0
    %258 = vmatpush1.bf16.msra.mxu0 %v214
    %259 = vmatprep.subr.bf16.mxu0 0
    %260 = vmatpush1.bf16.msra.mxu0 %v215
    %261 = vmatprep.subr.bf16.mxu0 0
    %262 = vmatpush1.bf16.msra.mxu0 %v216
    %263 = vmatprep.subr.bf16.mxu0 0
    %264 = vmatpush1.bf16.msra.mxu0 %v217
    %265 = vmatprep.subr.bf16.mxu0 0
    %266 = vmatpush1.bf16.msra.mxu0 %v218
    %267 = vmatprep.mubr.bf16.mxu0 %v99
    %268 = vmatmul.mubr.bf16.gmra.mrb[0].mxu0 %v98
    %v269 = vpop.f32.mrb[0].mxu0
    %v270 = vadd.f32 %v137, %v269
    %v271 = vpop.f32.mrb[0].mxu0
    %v272 = vpop.f32.mrb[0].mxu0
    %v273 = vadd.f32 %v137, %v272
    %v274 = vpop.f32.mrb[0].mxu0
    %275 = vdwg.mxu0
    %v276 = vmax.f32 %v270, 0.0
    %v277 = vmax.f32 %v273, 0.0
    %v278 = vpack.c.bf16 %v277, %v276
    %v279 = vld [vmem:[%s3] sm:$0xf]
    %v280 = vld [vmem:[%s3 + $0x4] sm:$0xf]
    %v281 = vld [vmem:[%s3 + $0x8] sm:$0xf]
    %v282 = vld [vmem:[%s3 + $0xc] sm:$0xf]
    %v283 = vld [vmem:[%s3 + $0x10] sm:$0xf]
    %v284 = vld [vmem:[%s3 + $0x14] sm:$0xf]
    %v285 = vld [vmem:[%s3 + $0x18] sm:$0xf]
    %v286 = vld [vmem:[%s3 + $0x1c] sm:$0xf]
    %v287 = vld [vmem:[%s3 + $0x20] sm:$0xf]
    %v288 = vld [vmem:[%s3 + $0x24] sm:$0xf]
    %v289 = vld [vmem:[%s3 + $0x28] sm:$0xf]
    %v290 = vld [vmem:[%s3 + $0x2c] sm:$0xf]
    %v291 = vld [vmem:[%s3 + $0x30] sm:$0xf]
    %v292 = vld [vmem:[%s3 + $0x34] sm:$0xf]
    %v293 = vld [vmem:[%s3 + $0x38] sm:$0xf]
    %v294 = vld [vmem:[%s3 + $0x3c] sm:$0xf]
    %v295 = vld [vmem:[%s4] sm:$0x1]
    %v297 = vlaneseq
    %v298 = vshrl.u32 %v297, 7
    %v299 = vsub.s32 0, %v298
    %v300 = vrot.slane %v295, %v299
    %v318 = vunpack.c.l.b16 %v279
    %v319 = vunpack.c.l.b16 %v280
    %v320 = vunpack.c.l.b16 %v281
    %v321 = vunpack.c.l.b16 %v282
    %v322 = vunpack.c.l.b16 %v283
    %v323 = vunpack.c.l.b16 %v284
    %v324 = vunpack.c.l.b16 %v285
    %v325 = vunpack.c.l.b16 %v286
    %v326 = vunpack.c.l.b16 %v287
    %v327 = vunpack.c.l.b16 %v288
    %v328 = vunpack.c.l.b16 %v289
    %v329 = vunpack.c.l.b16 %v290
    %v330 = vunpack.c.l.b16 %v291
    %v331 = vunpack.c.l.b16 %v292
    %v332 = vunpack.c.l.b16 %v293
    %v333 = vunpack.c.l.b16 %v294
    %v334 = vpack.c.b16 %v319, %v318
    %v335 = vpack.c.b16 %v321, %v320
    %v336 = vpack.c.b16 %v323, %v322
    %v337 = vpack.c.b16 %v325, %v324
    %v338 = vpack.c.b16 %v327, %v326
    %v339 = vpack.c.b16 %v329, %v328
    %v340 = vpack.c.b16 %v331, %v330
    %v341 = vpack.c.b16 %v333, %v332
    %350 = vmatprep.subr.bf16.mxu0 0
    %351 = vmatpush1.bf16.msra.mxu0 %v334
    %352 = vmatprep.subr.bf16.mxu0 0
    %353 = vmatpush1.bf16.msra.mxu0 %v335
    %354 = vmatprep.subr.bf16.mxu0 0
    %355 = vmatpush1.bf16.msra.mxu0 %v336
    %356 = vmatprep.subr.bf16.mxu0 0
    %357 = vmatpush1.bf16.msra.mxu0 %v337
    %358 = vmatprep.subr.bf16.mxu0 0
    %359 = vmatpush1.bf16.msra.mxu0 %v338
    %360 = vmatprep.subr.bf16.mxu0 0
    %361 = vmatpush1.bf16.msra.mxu0 %v339
    %362 = vmatprep.subr.bf16.mxu0 0
    %363 = vmatpush1.bf16.msra.mxu0 %v340
    %364 = vmatprep.subr.bf16.mxu0 0
    %365 = vmatpush1.bf16.msra.mxu0 %v341
    %366 = vmatprep.subr.bf16.mxu0 0
    %367 = vmatpush1.bf16.msra.mxu0 0
    %368 = vmatprep.subr.bf16.mxu0 0
    %369 = vmatpush1.bf16.msra.mxu0 0
    %370 = vmatprep.subr.bf16.mxu0 0
    %371 = vmatpush1.bf16.msra.mxu0 0
    %372 = vmatprep.subr.bf16.mxu0 0
    %373 = vmatpush1.bf16.msra.mxu0 0
    %374 = vmatprep.subr.bf16.mxu0 0
    %375 = vmatpush1.bf16.msra.mxu0 0
    %376 = vmatprep.subr.bf16.mxu0 0
    %377 = vmatpush1.bf16.msra.mxu0 0
    %378 = vmatprep.subr.bf16.mxu0 0
    %379 = vmatpush1.bf16.msra.mxu0 0
    %380 = vmatprep.subr.bf16.mxu0 0
    %381 = vmatpush1.bf16.msra.mxu0 0
    %382 = vmatprep.mubr.bf16.mxu0 0
    %383 = vmatmul.mubr.bf16.gmra.mrb[0].mxu0 %v278
    %v384 = vpop.f32.mrb[0].mxu0
    %v385 = vadd.f32 %v300, %v384
    %v386 = vpop.f32.mrb[0].mxu0
    %v387 = vpop.f32.mrb[0].mxu0
    %v388 = vadd.f32 %v300, %v387
    %v389 = vpop.f32.mrb[0].mxu0
    %390 = vdwg.mxu0
    %v391 = vmax.f32 %v385, 0.0
    %v392 = vmax.f32 %v388, 0.0
    %v393 = vpack.c.bf16 %v392, %v391
    %v394 = vld [vmem:[#allocation4] sm:$0xf]
    %v395 = vld [vmem:[#allocation4 + $0x4] sm:$0xf]
    %v396 = vld [vmem:[#allocation4 + $0x8] sm:$0xf]
    %v397 = vld [vmem:[#allocation4 + $0xc] sm:$0xf]
    %v398 = vld [vmem:[#allocation4 + $0x10] sm:$0xf]
    %v399 = vld [vmem:[#allocation4 + $0x14] sm:$0xf]
    %v400 = vld [vmem:[#allocation4 + $0x18] sm:$0xf]
    %v401 = vld [vmem:[#allocation4 + $0x1c] sm:$0xf]
    %v402 = vld [vmem:[#allocation4 + $0x20] sm:$0xf]
    %v403 = vld [vmem:[#allocation4 + $0x24] sm:$0xf]
    %v404 = vld [vmem:[#allocation4 + $0x28] sm:$0xf]
    %v405 = vld [vmem:[#allocation4 + $0x2c] sm:$0xf]
    %v406 = vld [vmem:[#allocation4 + $0x30] sm:$0xf]
    %v407 = vld [vmem:[#allocation4 + $0x34] sm:$0xf]
    %v408 = vld [vmem:[#allocation4 + $0x38] sm:$0xf]
    %v409 = vld [vmem:[#allocation4 + $0x3c] sm:$0xf]
    %v410 = vld [vmem:[%s6] sm:$0x1]
    %v412 = vlaneseq
    %v413 = vshrl.u32 %v412, 7
    %v414 = vsub.s32 0, %v413
    %v415 = vrot.slane %v410, %v414
    %v433 = vunpack.c.l.b16 %v394
    %v434 = vunpack.c.l.b16 %v395
    %v435 = vunpack.c.l.b16 %v396
    %v436 = vunpack.c.l.b16 %v397
    %v437 = vunpack.c.l.b16 %v398
    %v438 = vunpack.c.l.b16 %v399
    %v439 = vunpack.c.l.b16 %v400
    %v440 = vunpack.c.l.b16 %v401
    %v441 = vunpack.c.l.b16 %v402
    %v442 = vunpack.c.l.b16 %v403
    %v443 = vunpack.c.l.b16 %v404
    %v444 = vunpack.c.l.b16 %v405
    %v445 = vunpack.c.l.b16 %v406
    %v446 = vunpack.c.l.b16 %v407
    %v447 = vunpack.c.l.b16 %v408
    %v448 = vunpack.c.l.b16 %v409
    %v449 = vpack.c.b16 %v434, %v433
    %v450 = vpack.c.b16 %v436, %v435
    %v451 = vpack.c.b16 %v438, %v437
    %v452 = vpack.c.b16 %v440, %v439
    %v453 = vpack.c.b16 %v442, %v441
    %v454 = vpack.c.b16 %v444, %v443
    %v455 = vpack.c.b16 %v446, %v445
    %v456 = vpack.c.b16 %v448, %v447
    %465 = vmatprep.subr.bf16.mxu0 0
    %466 = vmatpush1.bf16.msra.mxu0 %v449
    %467 = vmatprep.subr.bf16.mxu0 0
    %468 = vmatpush1.bf16.msra.mxu0 %v450
    %469 = vmatprep.subr.bf16.mxu0 0
    %470 = vmatpush1.bf16.msra.mxu0 %v451
    %471 = vmatprep.subr.bf16.mxu0 0
    %472 = vmatpush1.bf16.msra.mxu0 %v452
    %473 = vmatprep.subr.bf16.mxu0 0
    %474 = vmatpush1.bf16.msra.mxu0 %v453
    %475 = vmatprep.subr.bf16.mxu0 0
    %476 = vmatpush1.bf16.msra.mxu0 %v454
    %477 = vmatprep.subr.bf16.mxu0 0
    %478 = vmatpush1.bf16.msra.mxu0 %v455
    %479 = vmatprep.subr.bf16.mxu0 0
    %480 = vmatpush1.bf16.msra.mxu0 %v456
    %481 = vmatprep.subr.bf16.mxu0 0
    %482 = vmatpush1.bf16.msra.mxu0 0
    %483 = vmatprep.subr.bf16.mxu0 0
    %484 = vmatpush1.bf16.msra.mxu0 0
    %485 = vmatprep.subr.bf16.mxu0 0
    %486 = vmatpush1.bf16.msra.mxu0 0
    %487 = vmatprep.subr.bf16.mxu0 0
    %488 = vmatpush1.bf16.msra.mxu0 0
    %489 = vmatprep.subr.bf16.mxu0 0
    %490 = vmatpush1.bf16.msra.mxu0 0
    %491 = vmatprep.subr.bf16.mxu0 0
    %492 = vmatpush1.bf16.msra.mxu0 0
    %493 = vmatprep.subr.bf16.mxu0 0
    %494 = vmatpush1.bf16.msra.mxu0 0
    %495 = vmatprep.subr.bf16.mxu0 0
    %496 = vmatpush1.bf16.msra.mxu0 0
    %497 = vmatprep.mubr.bf16.mxu0 0
    %498 = vmatmul.mubr.bf16.gmra.mrb[0].mxu0 %v393
    %v499 = vpop.f32.mrb[0].mxu0
    %v500 = vadd.f32 %v415, %v499
    %v501 = vpop.f32.mrb[0].mxu0
    %v502 = vpop.f32.mrb[0].mxu0
    %v503 = vadd.f32 %v415, %v502
    %v504 = vpop.f32.mrb[0].mxu0
    %505 = vdwg.mxu0
    %v506 = vmax.f32 %v500, 0.0
    %v507 = vmax.f32 %v503, 0.0
    %v508 = vpack.c.bf16 %v507, %v506
    %v509 = vld [vmem:[#allocation6] sm:$0xf]
    %v510 = vld [vmem:[#allocation6 + $0x4] sm:$0xf]
    %v511 = vld [vmem:[#allocation6 + $0x8] sm:$0xf]
    %v512 = vld [vmem:[#allocation6 + $0xc] sm:$0xf]
    %v513 = vld [vmem:[#allocation6 + $0x10] sm:$0xf]
    %v514 = vld [vmem:[#allocation6 + $0x14] sm:$0xf]
    %v515 = vld [vmem:[#allocation6 + $0x18] sm:$0xf]
    %v516 = vld [vmem:[#allocation6 + $0x1c] sm:$0xf]
    %v517 = vld [vmem:[#allocation6 + $0x20] sm:$0xf]
    %v518 = vld [vmem:[#allocation6 + $0x24] sm:$0xf]
    %v519 = vld [vmem:[#allocation6 + $0x28] sm:$0xf]
    %v520 = vld [vmem:[#allocation6 + $0x2c] sm:$0xf]
    %v521 = vld [vmem:[#allocation6 + $0x30] sm:$0xf]
    %v522 = vld [vmem:[#allocation6 + $0x34] sm:$0xf]
    %v523 = vld [vmem:[#allocation6 + $0x38] sm:$0xf]
    %v524 = vld [vmem:[#allocation6 + $0x3c] sm:$0xf]
    %v525 = vld [vmem:[%s8] sm:$0x1]
    %v527 = vlaneseq
    %v528 = vshrl.u32 %v527, 7
    %v529 = vsub.s32 0, %v528
    %v530 = vrot.slane %v525, %v529
    %v548 = vunpack.c.l.b16 %v509
    %v549 = vunpack.c.l.b16 %v510
    %v550 = vunpack.c.l.b16 %v511
    %v551 = vunpack.c.l.b16 %v512
    %v552 = vunpack.c.l.b16 %v513
    %v553 = vunpack.c.l.b16 %v514
    %v554 = vunpack.c.l.b16 %v515
    %v555 = vunpack.c.l.b16 %v516
    %v556 = vunpack.c.l.b16 %v517
    %v557 = vunpack.c.l.b16 %v518
    %v558 = vunpack.c.l.b16 %v519
    %v559 = vunpack.c.l.b16 %v520
    %v560 = vunpack.c.l.b16 %v521
    %v561 = vunpack.c.l.b16 %v522
    %v562 = vunpack.c.l.b16 %v523
    %v563 = vunpack.c.l.b16 %v524
    %v564 = vpack.c.b16 %v549, %v548
    %v565 = vpack.c.b16 %v551, %v550
    %v566 = vpack.c.b16 %v553, %v552
    %v567 = vpack.c.b16 %v555, %v554
    %v568 = vpack.c.b16 %v557, %v556
    %v569 = vpack.c.b16 %v559, %v558
    %v570 = vpack.c.b16 %v561, %v560
    %v571 = vpack.c.b16 %v563, %v562
    %580 = vmatprep.subr.bf16.mxu0 0
    %581 = vmatpush1.bf16.msra.mxu0 %v564
    %582 = vmatprep.subr.bf16.mxu0 0
    %583 = vmatpush1.bf16.msra.mxu0 %v565
    %584 = vmatprep.subr.bf16.mxu0 0
    %585 = vmatpush1.bf16.msra.mxu0 %v566
    %586 = vmatprep.subr.bf16.mxu0 0
    %587 = vmatpush1.bf16.msra.mxu0 %v567
    %588 = vmatprep.subr.bf16.mxu0 0
    %589 = vmatpush1.bf16.msra.mxu0 %v568
    %590 = vmatprep.subr.bf16.mxu0 0
    %591 = vmatpush1.bf16.msra.mxu0 %v569
    %592 = vmatprep.subr.bf16.mxu0 0
    %593 = vmatpush1.bf16.msra.mxu0 %v570
    %594 = vmatprep.subr.bf16.mxu0 0
    %595 = vmatpush1.bf16.msra.mxu0 %v571
    %596 = vmatprep.subr.bf16.mxu0 0
    %597 = vmatpush1.bf16.msra.mxu0 0
    %598 = vmatprep.subr.bf16.mxu0 0
    %599 = vmatpush1.bf16.msra.mxu0 0
    %600 = vmatprep.subr.bf16.mxu0 0
    %601 = vmatpush1.bf16.msra.mxu0 0
    %602 = vmatprep.subr.bf16.mxu0 0
    %603 = vmatpush1.bf16.msra.mxu0 0
    %604 = vmatprep.subr.bf16.mxu0 0
    %605 = vmatpush1.bf16.msra.mxu0 0
    %606 = vmatprep.subr.bf16.mxu0 0
    %607 = vmatpush1.bf16.msra.mxu0 0
    %608 = vmatprep.subr.bf16.mxu0 0
    %609 = vmatpush1.bf16.msra.mxu0 0
    %610 = vmatprep.subr.bf16.mxu0 0
    %611 = vmatpush1.bf16.msra.mxu0 0
    %612 = vmatprep.mubr.bf16.mxu0 0
    %613 = vmatmul.mubr.bf16.gmra.mrb[0].mxu0 %v508
    %v614 = vpop.f32.mrb[0].mxu0
    %v615 = vadd.f32 %v530, %v614
    %v616 = vpop.f32.mrb[0].mxu0
    %v617 = vpop.f32.mrb[0].mxu0
    %v618 = vadd.f32 %v530, %v617
    %v619 = vpop.f32.mrb[0].mxu0
    %620 = vdwg.mxu0
    %v621 = vmax.f32 %v615, 0.0
    %v622 = vmax.f32 %v618, 0.0
    %v623 = vpack.c.bf16 %v622, %v621
    %v624 = vld [vmem:[#allocation7] sm:$0xf]
    %v625 = vld [vmem:[#allocation7 + $0x4] sm:$0xf]
    %v626 = vld [vmem:[#allocation7 + $0x8] sm:$0xf]
    %v627 = vld [vmem:[#allocation7 + $0xc] sm:$0xf]
    %v628 = vld [vmem:[#allocation7 + $0x10] sm:$0xf]
    %v629 = vld [vmem:[#allocation7 + $0x14] sm:$0xf]
    %v630 = vld [vmem:[#allocation7 + $0x18] sm:$0xf]
    %v631 = vld [vmem:[#allocation7 + $0x1c] sm:$0xf]
    %v632 = vld [vmem:[#allocation7 + $0x20] sm:$0xf]
    %v633 = vld [vmem:[#allocation7 + $0x24] sm:$0xf]
    %v634 = vld [vmem:[#allocation7 + $0x28] sm:$0xf]
    %v635 = vld [vmem:[#allocation7 + $0x2c] sm:$0xf]
    %v636 = vld [vmem:[#allocation7 + $0x30] sm:$0xf]
    %v637 = vld [vmem:[#allocation7 + $0x34] sm:$0xf]
    %v638 = vld [vmem:[#allocation7 + $0x38] sm:$0xf]
    %v639 = vld [vmem:[#allocation7 + $0x3c] sm:$0xf]
    %v640 = vld [vmem:[%s10] sm:$0x1]
    %v642 = vlaneseq
    %v643 = vshrl.u32 %v642, 7
    %v644 = vsub.s32 0, %v643
    %v645 = vrot.slane %v640, %v644
    %v663 = vunpack.c.l.b16 %v624
    %v664 = vunpack.c.l.b16 %v625
    %v665 = vunpack.c.l.b16 %v626
    %v666 = vunpack.c.l.b16 %v627
    %v667 = vunpack.c.l.b16 %v628
    %v668 = vunpack.c.l.b16 %v629
    %v669 = vunpack.c.l.b16 %v630
    %v670 = vunpack.c.l.b16 %v631
    %v671 = vunpack.c.l.b16 %v632
    %v672 = vunpack.c.l.b16 %v633
    %v673 = vunpack.c.l.b16 %v634
    %v674 = vunpack.c.l.b16 %v635
    %v675 = vunpack.c.l.b16 %v636
    %v676 = vunpack.c.l.b16 %v637
    %v677 = vunpack.c.l.b16 %v638
    %v678 = vunpack.c.l.b16 %v639
    %v679 = vpack.c.b16 %v664, %v663
    %v680 = vpack.c.b16 %v666, %v665
    %v681 = vpack.c.b16 %v668, %v667
    %v682 = vpack.c.b16 %v670, %v669
    %v683 = vpack.c.b16 %v672, %v671
    %v684 = vpack.c.b16 %v674, %v673
    %v685 = vpack.c.b16 %v676, %v675
    %v686 = vpack.c.b16 %v678, %v677
    %695 = vmatprep.subr.bf16.mxu0 0
    %696 = vmatpush1.bf16.msra.mxu0 %v679
    %697 = vmatprep.subr.bf16.mxu0 0
    %698 = vmatpush1.bf16.msra.mxu0 %v680
    %699 = vmatprep.subr.bf16.mxu0 0
    %700 = vmatpush1.bf16.msra.mxu0 %v681
    %701 = vmatprep.subr.bf16.mxu0 0
    %702 = vmatpush1.bf16.msra.mxu0 %v682
    %703 = vmatprep.subr.bf16.mxu0 0
    %704 = vmatpush1.bf16.msra.mxu0 %v683
    %705 = vmatprep.subr.bf16.mxu0 0
    %706 = vmatpush1.bf16.msra.mxu0 %v684
    %707 = vmatprep.subr.bf16.mxu0 0
    %708 = vmatpush1.bf16.msra.mxu0 %v685
    %709 = vmatprep.subr.bf16.mxu0 0
    %710 = vmatpush1.bf16.msra.mxu0 %v686
    %711 = vmatprep.subr.bf16.mxu0 0
    %712 = vmatpush1.bf16.msra.mxu0 0
    %713 = vmatprep.subr.bf16.mxu0 0
    %714 = vmatpush1.bf16.msra.mxu0 0
    %715 = vmatprep.subr.bf16.mxu0 0
    %716 = vmatpush1.bf16.msra.mxu0 0
    %717 = vmatprep.subr.bf16.mxu0 0
    %718 = vmatpush1.bf16.msra.mxu0 0
    %719 = vmatprep.subr.bf16.mxu0 0
    %720 = vmatpush1.bf16.msra.mxu0 0
    %721 = vmatprep.subr.bf16.mxu0 0
    %722 = vmatpush1.bf16.msra.mxu0 0
    %723 = vmatprep.subr.bf16.mxu0 0
    %724 = vmatpush1.bf16.msra.mxu0 0
    %725 = vmatprep.subr.bf16.mxu0 0
    %726 = vmatpush1.bf16.msra.mxu0 0
    %727 = vmatprep.mubr.bf16.mxu0 0
    %728 = vmatmul.mubr.bf16.gmra.mrb[0].mxu0 %v623
    %v729 = vpop.f32.mrb[0].mxu0
    %v730 = vadd.f32 %v645, %v729
    %v731 = vpop.f32.mrb[0].mxu0
    %v732 = vpop.f32.mrb[0].mxu0
    %v733 = vadd.f32 %v645, %v732
    %v734 = vpop.f32.mrb[0].mxu0
    %735 = vdwg.mxu0
    %736 = vst [vmem:[%s11] sm:$0xff] %v730
    %737 = vst [vmem:[%s11 + $0x8] sm:$0xff] %v733
    // Predicated region
    $region62: #{mlp_classifier_forward.1} parent=1 // pred_check
      _
    $region63: #{mlp_classifier_forward.1} parent=1 // pred_check_branch
      %739 = sbr.rel (0) target = $region65
    $region64: #{mlp_classifier_forward.1} parent=1 // pred_region
      _
    $region65: #{mlp_classifier_forward.1} parent=1 // pred_fallthru
      _
    // Predicated region
    $region66: #{mlp_classifier_forward.1} parent=1 // pred_check
      _
    $region67: #{mlp_classifier_forward.1} parent=1 // pred_check_branch
      %741 = sbr.rel (0) target = $region69
    $region68: #{mlp_classifier_forward.1} parent=1 // pred_region
      _
    $region69: #{mlp_classifier_forward.1} parent=1 // pred_fallthru
      _
    %742 = vsyncpa [#allocation3], 1
    %743 = vsyncpa [#allocation5], 1
    %744 = vsyncpa [#allocation8], 1

</llo_original>
